<compile_context>
chip_gen: v7x
topology: tpu7x:2x2x1
jax: 0.10.0
libtpu: 0.0.40
codegen_flags: <defaults>
</compile_context>

<pallas_src>
import jax
import jax.numpy as jnp
from jax.experimental import pallas as pl
from jax.experimental.pallas import tpu as pltpu


def autoencoder_kernel(x_ref,
                       w1_ref, w2_ref, w3_ref,   # encoder (MLP) weights
                       w4_ref, w5_ref, w6_ref,   # decoder weights
                       z_ref, xre_ref, se_ref):
    x = x_ref[...]                       # (TM, D), bf16
    cd = x.dtype
    f32 = jnp.float32

    # ---- encoder: Linear -> ReLU -> Linear -> ReLU -> Linear ----
    h = jnp.dot(x, w1_ref[...], preferred_element_type=f32)
    h = jnp.maximum(h, 0.0)
    h = jnp.dot(h.astype(cd), w2_ref[...], preferred_element_type=f32)
    h = jnp.maximum(h, 0.0)
    z = jnp.dot(h.astype(cd), w3_ref[...], preferred_element_type=f32)
    z_ref[...] = z.astype(z_ref.dtype)

    # ---- decoder: Linear -> ReLU -> Linear -> ReLU -> Linear ----
    d = jnp.dot(z.astype(cd), w4_ref[...], preferred_element_type=f32)
    d = jnp.maximum(d, 0.0)
    d = jnp.dot(d.astype(cd), w5_ref[...], preferred_element_type=f32)
    d = jnp.maximum(d, 0.0)
    x_re = jnp.dot(d.astype(cd), w6_ref[...], preferred_element_type=f32)
    xre_ref[...] = x_re.astype(xre_ref.dtype)

    # ---- fused reconstruction-loss numerator: sum((x - x_re)^2, axis=-1) ----
    err = x.astype(f32) - x_re
    se_ref[...] = jnp.sum(err * err, axis=-1, keepdims=True)


def _round_up(x, m):
    return (x + m - 1) // m * m


def autoencoder_forward(x_in, weights, *, tm=256, compute_dtype=jnp.bfloat16):
    """x_in: (B, S, D) float32.  weights: 6 arrays, each (in_dim, out_dim).

    Returns (z, x_re, loss) with z: (B, S, Z), x_re: (B, S, D) in float32 and
    loss = mean over (b, s) of sum((x_in - x_re)**2, dim=-1) computed in-kernel
    (using the bf16-cast input, matching the kernel's compute precision).
    """
    B, S, D = x_in.shape
    M = B * S
    z_dim = weights[2].shape[1]

    # Row-tile size: 128-256 rows keeps activations in vregs; clamp for tiny M.
    TM = min(tm, _round_up(M, 8))
    M_pad = _round_up(M, TM)

    x2d = x_in.reshape(M, D).astype(compute_dtype)
    if M_pad != M:
        x2d = jnp.pad(x2d, ((0, M_pad - M), (0, 0)))
    ws = [w.astype(compute_dtype) for w in weights]

    grid = (pl.cdiv(M_pad, TM),)

    def row_spec(n):
        return pl.BlockSpec((TM, n), lambda i: (i, 0))

    def weight_spec(w):
        # Constant block index -> weight stays VMEM-resident across all tiles.
        return pl.BlockSpec(w.shape, lambda i: (0, 0))

    z2d, xre2d, se = pl.pallas_call(
        autoencoder_kernel,
        grid=grid,
        in_specs=[row_spec(D)] + [weight_spec(w) for w in ws],
        out_specs=(row_spec(z_dim), row_spec(D), row_spec(1)),
        out_shape=(jax.ShapeDtypeStruct((M_pad, z_dim), jnp.float32),
                   jax.ShapeDtypeStruct((M_pad, D), jnp.float32),
                   jax.ShapeDtypeStruct((M_pad, 1), jnp.float32)),
        compiler_params=pltpu.CompilerParams(
            dimension_semantics=("parallel",)),
    )(x2d, *ws)

    z = z2d[:M].reshape(B, S, z_dim)
    x_re = xre2d[:M].reshape(B, S, D)
    loss = jnp.mean(se[:M, 0])
    return z, x_re, loss


def reference_forward(x_in, weights, compute_dtype=jnp.bfloat16):
    """Pure-JAX reference mirroring the kernel's precision choices."""
    f32 = jnp.float32
    B, S, D = x_in.shape
    x = x_in.reshape(B * S, D).astype(compute_dtype)
    ws = [w.astype(compute_dtype) for w in weights]

    h = jnp.maximum(jnp.dot(x, ws[0], preferred_element_type=f32), 0.0)
    h = jnp.maximum(jnp.dot(h.astype(compute_dtype), ws[1],
                            preferred_element_type=f32), 0.0)
    z = jnp.dot(h.astype(compute_dtype), ws[2], preferred_element_type=f32)
    d = jnp.maximum(jnp.dot(z.astype(compute_dtype), ws[3],
                            preferred_element_type=f32), 0.0)
    d = jnp.maximum(jnp.dot(d.astype(compute_dtype), ws[4],
                            preferred_element_type=f32), 0.0)
    x_re = jnp.dot(d.astype(compute_dtype), ws[5], preferred_element_type=f32)

    se = jnp.sum((x.astype(f32) - x_re) ** 2, axis=-1)
    z_dim = ws[2].shape[1]
    return (z.reshape(B, S, z_dim), x_re.reshape(B, S, D), jnp.mean(se))


if __name__ == "__main__":
    # Module hyper-params (small, consistent with __init__):
    #   x_dim has 5 entries -> n_unit = 4; z_in_dim = 8 -> input dim = 32
    n_unit = 4
    z_in_dim = 8
    hidden_dim = 32
    z_dim = 16
    in_dim = z_in_dim * n_unit      # 32

    B, S = 2, 8                      # x_in: (batch, seq, z_in_dim * n_unit)

    key = jax.random.PRNGKey(0)
    kx, *kw = jax.random.split(key, 7)

    x_in = jax.random.normal(kx, (B, S, in_dim), dtype=jnp.float32)

    # Deterministic init ~ reset_parameters(stdv=0.1); weights stored as
    # (in_dim, out_dim) (i.e. already transposed vs. torch's (out, in)).
    stdv = 0.1
    dims = [(in_dim, hidden_dim), (hidden_dim, hidden_dim), (hidden_dim, z_dim),
            (z_dim, hidden_dim), (hidden_dim, hidden_dim), (hidden_dim, in_dim)]
    weights = [stdv * jax.random.normal(k, d, dtype=jnp.float32)
               for k, d in zip(kw, dims)]

    z, x_re, loss = autoencoder_forward(x_in, weights)
    jax.block_until_ready((z, x_re, loss))

    z_ref, xre_ref, loss_ref = reference_forward(x_in, weights)
    assert jnp.allclose(z, z_ref, atol=2e-3, rtol=2e-3)
    assert jnp.allclose(x_re, xre_ref, atol=2e-3, rtol=2e-3)
    assert jnp.allclose(loss, loss_ref, atol=2e-3, rtol=2e-3)

    print("KERNEL_OK")
</pallas_src>

<mosaic_0001>
module attributes {stable_mosaic.version = 11 : i64} {
  func.func @autoencoder_kernel(%arg0: i32, %arg1: memref<16x32xbf16, #tpu.memory_space<vmem>>, %arg2: memref<32x32xbf16, #tpu.memory_space<vmem>>, %arg3: memref<32x32xbf16, #tpu.memory_space<vmem>>, %arg4: memref<32x16xbf16, #tpu.memory_space<vmem>>, %arg5: memref<16x32xbf16, #tpu.memory_space<vmem>>, %arg6: memref<32x32xbf16, #tpu.memory_space<vmem>>, %arg7: memref<32x32xbf16, #tpu.memory_space<vmem>>, %arg8: memref<16x16xf32, #tpu.memory_space<vmem>>, %arg9: memref<16x32xf32, #tpu.memory_space<vmem>>, %arg10: memref<16x1xf32, #tpu.memory_space<vmem>>) attributes {dimension_semantics = [#tpu.dimension_semantics<parallel>], iteration_bounds = array<i64: 1>, scalar_prefetch = 0 : i64, scratch_operands = 0 : i64, tpu.core_type = #tpu.core_type<tc>, window_params = [{transform_indices = @transform_0, window_bounds = array<i64: 16, 32>}, {pipeline_mode = #tpu.pipeline_mode<synchronous>, transform_indices = @transform_1, window_bounds = array<i64: 32, 32>}, {pipeline_mode = #tpu.pipeline_mode<synchronous>, transform_indices = @transform_2, window_bounds = array<i64: 32, 32>}, {pipeline_mode = #tpu.pipeline_mode<synchronous>, transform_indices = @transform_3, window_bounds = array<i64: 32, 16>}, {pipeline_mode = #tpu.pipeline_mode<synchronous>, transform_indices = @transform_4, window_bounds = array<i64: 16, 32>}, {pipeline_mode = #tpu.pipeline_mode<synchronous>, transform_indices = @transform_5, window_bounds = array<i64: 32, 32>}, {pipeline_mode = #tpu.pipeline_mode<synchronous>, transform_indices = @transform_6, window_bounds = array<i64: 32, 32>}, {transform_indices = @transform_7, window_bounds = array<i64: 16, 16>}, {transform_indices = @transform_8, window_bounds = array<i64: 16, 32>}, {transform_indices = @transform_9, window_bounds = array<i64: 16, 1>}]} {
    %c0 = arith.constant 0 : index
    %c0_0 = arith.constant 0 : index
    %0 = vector.load %arg1[%c0, %c0_0] : memref<16x32xbf16, #tpu.memory_space<vmem>>, vector<16x32xbf16>
    %c0_1 = arith.constant 0 : index
    %c0_2 = arith.constant 0 : index
    %1 = vector.load %arg2[%c0_1, %c0_2] : memref<32x32xbf16, #tpu.memory_space<vmem>>, vector<32x32xbf16>
    %cst = arith.constant dense<0.000000e+00> : vector<16x32xf32>
    %2 = tpu.matmul %0, %1, %cst {dimension_numbers = #tpu.dot_dimension_numbers<[1], [0], [0], [1], [0, 0, 1, 1], [], []>} : vector<16x32xbf16>, vector<32x32xbf16>, vector<16x32xf32> -> vector<16x32xf32>
    %cst_3 = arith.constant 0.000000e+00 : f32
    %3 = vector.broadcast %cst_3 : f32 to vector<16x32xf32>
    %4 = arith.maximumf %2, %3 : vector<16x32xf32>
    %5 = arith.truncf %4 : vector<16x32xf32> to vector<16x32xbf16>
    %c0_4 = arith.constant 0 : index
    %c0_5 = arith.constant 0 : index
    %6 = vector.load %arg3[%c0_4, %c0_5] : memref<32x32xbf16, #tpu.memory_space<vmem>>, vector<32x32xbf16>
    %cst_6 = arith.constant dense<0.000000e+00> : vector<16x32xf32>
    %7 = tpu.matmul %5, %6, %cst_6 {dimension_numbers = #tpu.dot_dimension_numbers<[1], [0], [0], [1], [0, 0, 1, 1], [], []>} : vector<16x32xbf16>, vector<32x32xbf16>, vector<16x32xf32> -> vector<16x32xf32>
    %cst_7 = arith.constant 0.000000e+00 : f32
    %8 = vector.broadcast %cst_7 : f32 to vector<16x32xf32>
    %9 = arith.maximumf %7, %8 : vector<16x32xf32>
    %10 = arith.truncf %9 : vector<16x32xf32> to vector<16x32xbf16>
    %c0_8 = arith.constant 0 : index
    %c0_9 = arith.constant 0 : index
    %11 = vector.load %arg4[%c0_8, %c0_9] : memref<32x16xbf16, #tpu.memory_space<vmem>>, vector<32x16xbf16>
    %cst_10 = arith.constant dense<0.000000e+00> : vector<16x16xf32>
    %12 = tpu.matmul %10, %11, %cst_10 {dimension_numbers = #tpu.dot_dimension_numbers<[1], [0], [0], [1], [0, 0, 1, 1], [], []>} : vector<16x32xbf16>, vector<32x16xbf16>, vector<16x16xf32> -> vector<16x16xf32>
    %c0_11 = arith.constant 0 : index
    %c0_12 = arith.constant 0 : index
    %13 = vector.load %arg8[%c0_11, %c0_12] : memref<16x16xf32, #tpu.memory_space<vmem>>, vector<16x16xf32>
    tpu.vector_store %arg8[%c0_11, %c0_12], %12 {strides = array<i32>} : memref<16x16xf32, #tpu.memory_space<vmem>>, vector<16x16xf32>,
    %14 = arith.truncf %12 : vector<16x16xf32> to vector<16x16xbf16>
    %c0_13 = arith.constant 0 : index
    %c0_14 = arith.constant 0 : index
    %15 = vector.load %arg5[%c0_13, %c0_14] : memref<16x32xbf16, #tpu.memory_space<vmem>>, vector<16x32xbf16>
    %cst_15 = arith.constant dense<0.000000e+00> : vector<16x32xf32>
    %16 = tpu.matmul %14, %15, %cst_15 {dimension_numbers = #tpu.dot_dimension_numbers<[1], [0], [0], [1], [0, 0, 1, 1], [], []>} : vector<16x16xbf16>, vector<16x32xbf16>, vector<16x32xf32> -> vector<16x32xf32>
    %cst_16 = arith.constant 0.000000e+00 : f32
    %17 = vector.broadcast %cst_16 : f32 to vector<16x32xf32>
    %18 = arith.maximumf %16, %17 : vector<16x32xf32>
    %19 = arith.truncf %18 : vector<16x32xf32> to vector<16x32xbf16>
    %c0_17 = arith.constant 0 : index
    %c0_18 = arith.constant 0 : index
    %20 = vector.load %arg6[%c0_17, %c0_18] : memref<32x32xbf16, #tpu.memory_space<vmem>>, vector<32x32xbf16>
    %cst_19 = arith.constant dense<0.000000e+00> : vector<16x32xf32>
    %21 = tpu.matmul %19, %20, %cst_19 {dimension_numbers = #tpu.dot_dimension_numbers<[1], [0], [0], [1], [0, 0, 1, 1], [], []>} : vector<16x32xbf16>, vector<32x32xbf16>, vector<16x32xf32> -> vector<16x32xf32>
    %cst_20 = arith.constant 0.000000e+00 : f32
    %22 = vector.broadcast %cst_20 : f32 to vector<16x32xf32>
    %23 = arith.maximumf %21, %22 : vector<16x32xf32>
    %24 = arith.truncf %23 : vector<16x32xf32> to vector<16x32xbf16>
    %c0_21 = arith.constant 0 : index
    %c0_22 = arith.constant 0 : index
    %25 = vector.load %arg7[%c0_21, %c0_22] : memref<32x32xbf16, #tpu.memory_space<vmem>>, vector<32x32xbf16>
    %cst_23 = arith.constant dense<0.000000e+00> : vector<16x32xf32>
    %26 = tpu.matmul %24, %25, %cst_23 {dimension_numbers = #tpu.dot_dimension_numbers<[1], [0], [0], [1], [0, 0, 1, 1], [], []>} : vector<16x32xbf16>, vector<32x32xbf16>, vector<16x32xf32> -> vector<16x32xf32>
    %c0_24 = arith.constant 0 : index
    %c0_25 = arith.constant 0 : index
    %27 = vector.load %arg9[%c0_24, %c0_25] : memref<16x32xf32, #tpu.memory_space<vmem>>, vector<16x32xf32>
    tpu.vector_store %arg9[%c0_24, %c0_25], %26 {strides = array<i32>} : memref<16x32xf32, #tpu.memory_space<vmem>>, vector<16x32xf32>,
    %28 = arith.extf %0 : vector<16x32xbf16> to vector<16x32xf32>
    %29 = arith.subf %28, %26 : vector<16x32xf32>
    %30 = arith.mulf %29, %29 : vector<16x32xf32>
    %cst_26 = arith.constant dense<0.000000e+00> : vector<16xf32>
    %31 = vector.multi_reduction <add>, %30, %cst_26 [1] : vector<16x32xf32> to vector<16xf32>
    %32 = vector.shape_cast %31 : vector<16xf32> to vector<16x1xf32>
    %c0_27 = arith.constant 0 : index
    %c0_28 = arith.constant 0 : index
    %33 = vector.load %arg10[%c0_27, %c0_28] : memref<16x1xf32, #tpu.memory_space<vmem>>, vector<16x1xf32>
    tpu.vector_store %arg10[%c0_27, %c0_28], %32 {strides = array<i32>} : memref<16x1xf32, #tpu.memory_space<vmem>>, vector<16x1xf32>,
    return
  }
  func.func @transform_0(%arg0: i32) -> (i32, i32) {
    %c0_i32 = arith.constant 0 : i32
    %c0_i32_0 = arith.constant 0 : i32
    return %arg0, %c0_i32 : i32, i32
  }
  func.func @transform_1(%arg0: i32) -> (i32, i32) {
    %c0_i32 = arith.constant 0 : i32
    %c0_i32_0 = arith.constant 0 : i32
    %c0_i32_1 = arith.constant 0 : i32
    return %c0_i32, %c0_i32_0 : i32, i32
  }
  func.func @transform_2(%arg0: i32) -> (i32, i32) {
    %c0_i32 = arith.constant 0 : i32
    %c0_i32_0 = arith.constant 0 : i32
    %c0_i32_1 = arith.constant 0 : i32
    return %c0_i32, %c0_i32_0 : i32, i32
  }
  func.func @transform_3(%arg0: i32) -> (i32, i32) {
    %c0_i32 = arith.constant 0 : i32
    %c0_i32_0 = arith.constant 0 : i32
    %c0_i32_1 = arith.constant 0 : i32
    return %c0_i32, %c0_i32_0 : i32, i32
  }
  func.func @transform_4(%arg0: i32) -> (i32, i32) {
    %c0_i32 = arith.constant 0 : i32
    %c0_i32_0 = arith.constant 0 : i32
    %c0_i32_1 = arith.constant 0 : i32
    return %c0_i32, %c0_i32_0 : i32, i32
  }
  func.func @transform_5(%arg0: i32) -> (i32, i32) {
    %c0_i32 = arith.constant 0 : i32
    %c0_i32_0 = arith.constant 0 : i32
    %c0_i32_1 = arith.constant 0 : i32
    return %c0_i32, %c0_i32_0 : i32, i32
  }
  func.func @transform_6(%arg0: i32) -> (i32, i32) {
    %c0_i32 = arith.constant 0 : i32
    %c0_i32_0 = arith.constant 0 : i32
    %c0_i32_1 = arith.constant 0 : i32
    return %c0_i32, %c0_i32_0 : i32, i32
  }
  func.func @transform_7(%arg0: i32) -> (i32, i32) {
    %c0_i32 = arith.constant 0 : i32
    %c0_i32_0 = arith.constant 0 : i32
    return %arg0, %c0_i32 : i32, i32
  }
  func.func @transform_8(%arg0: i32) -> (i32, i32) {
    %c0_i32 = arith.constant 0 : i32
    %c0_i32_0 = arith.constant 0 : i32
    return %arg0, %c0_i32 : i32, i32
  }
  func.func @transform_9(%arg0: i32) -> (i32, i32) {
    %c0_i32 = arith.constant 0 : i32
    %c0_i32_0 = arith.constant 0 : i32
    return %arg0, %c0_i32 : i32, i32
  }
}

</mosaic_0001>

<llo_original>
// kernel: tpu_custom_call.1
$region0: #{tpu_custom_call.1}
  #allocation0 [shape = 'u32[]', space=smem, size = 0x4, offset = 0x4, fixed_abs, tag = 'smem constant byte address 0x4 - core index']
  #allocation1 [shape = 'u32[144,128]{1,0:T(1,128)}', space=vmem, size = 0x12000, scoped, tag = 'internal scratch']
  %s0 = inlined_call_operand.hbm [shape: bf16[16,32], index: 0, kind: input, shape index: {}]
  %s1 = inlined_call_operand.vmem [shape: bf16[32,32], index: 1, kind: input, shape index: {}]
  %s2 = inlined_call_operand.hbm [shape: bf16[32,32], index: 2, kind: input, shape index: {}]
  %s3 = inlined_call_operand.vmem [shape: bf16[32,16], index: 3, kind: input, shape index: {}]
  %s4 = inlined_call_operand.hbm [shape: bf16[16,32], index: 4, kind: input, shape index: {}]
  %s5 = inlined_call_operand.vmem [shape: bf16[32,32], index: 5, kind: input, shape index: {}]
  %s6 = inlined_call_operand.hbm [shape: bf16[32,32], index: 6, kind: input, shape index: {}]
  %s7 = inlined_call_operand.hbm [shape: f32[16,16], index: 7, kind: output, shape index: {0}]
  %s8 = inlined_call_operand.hbm [shape: f32[16,32], index: 8, kind: output, shape index: {1}]
  %s9 = inlined_call_operand.vmem [shape: f32[16,1], index: 9, kind: output, shape index: {2}]
  %10 = xla_tuple %s7, %s8, %s9
  %s11 = sld [smem:[#allocation0]]
  $region70: #{tpu_custom_call.1} parent=0
    _
  %s13 = ssub.s32 1, %s11
  %s14 = scalar_select 0, %s13, %s11
  $region1: #{tpu_custom_call.1} parent=0
    #allocation2 [shape = 'u8[4096]{0}', space=vmem, size = 0x1000, scoped, tag = 'input window, operand 0, single buffered']
    #allocation3 [shape = 's32[1]{0}', space=sflag, size = 0x4, scoped, tag = 'scoped memory for tpu_custom_call.1']
    #allocation4 [shape = 's32[1]{0}', space=sflag, size = 0x4, scoped, tag = 'scoped memory for tpu_custom_call.1']
    #allocation5 [shape = 'u8[8192]{0}', space=vmem, size = 0x2000, scoped, tag = 'input window, operand 2, single buffered']
    #allocation6 [shape = 's32[1]{0}', space=sflag, size = 0x4, scoped, tag = 'scoped memory for tpu_custom_call.1']
    #allocation7 [shape = 'u8[4096]{0}', space=vmem, size = 0x1000, scoped, tag = 'input window, operand 4, single buffered']
    #allocation8 [shape = 'u8[8192]{0}', space=vmem, size = 0x2000, scoped, tag = 'input window, operand 6, single buffered']
    #allocation9 [shape = 's32[1]{0}', space=sflag, size = 0x4, scoped, tag = 'scoped memory for tpu_custom_call.1']
    #allocation10 [shape = 'u8[8192]{0}', space=vmem, size = 0x2000, scoped, tag = 'output window, operand 0, single buffered']
    #allocation11 [shape = 'u8[8192]{0}', space=vmem, size = 0x2000, scoped, tag = 'output window, operand 1, single buffered']
    #allocation12 [shape = 's32[1]{0}', space=sflag, size = 0x4, scoped, tag = 'scoped memory for tpu_custom_call.1']
    %15 = vsyncpa [#allocation3], 0
    %16 = vsyncpa [#allocation6], 0
    %17 = vsyncpa [#allocation9], 0
    %18 = vsyncpa [#allocation4], 0
    %19 = vsyncpa [#allocation12], 0
    // Predicated region
    $region2: #{tpu_custom_call.1} parent=1 // pred_check
      _
    $region3: #{tpu_custom_call.1} parent=1 // pred_check_branch
      %21 = sbr.rel (0) target = $region5
    $region4: #{tpu_custom_call.1} parent=1 // pred_region
      %s23 = ssub.s32 128, 128
      %24 = vsyncadd [#allocation3], %s23
      %s25 = sshll.u32 [#allocation2], 4
      %s26 = int_to_ptr.vmem [resolvable:$true] %s25
      %31 = dma.hbm_to_vmem [thread:$0]  %s0, 128, %s26, [#allocation3], 64, 64, 4
    $region5: #{tpu_custom_call.1} parent=1 // pred_fallthru
      _
    // Predicated region
    $region6: #{tpu_custom_call.1} parent=1 // pred_check
      _
    $region7: #{tpu_custom_call.1} parent=1 // pred_check_branch
      %33 = sbr.rel (0) target = $region9
    $region8: #{tpu_custom_call.1} parent=1 // pred_region
      _
    $region9: #{tpu_custom_call.1} parent=1 // pred_fallthru
      _
    // Predicated region
    $region10: #{tpu_custom_call.1} parent=1 // pred_check
      _
    $region11: #{tpu_custom_call.1} parent=1 // pred_check_branch
      %35 = sbr.rel (0) target = $region13
    $region12: #{tpu_custom_call.1} parent=1 // pred_region
      %s37 = ssub.s32 256, 256
      %38 = vsyncadd [#allocation6], %s37
      %s39 = sshll.u32 [#allocation5], 4
      %s40 = int_to_ptr.vmem [resolvable:$true] %s39
      %45 = dma.hbm_to_vmem [thread:$0]  %s2, 256, %s40, [#allocation6], 64, 64, 4
    $region13: #{tpu_custom_call.1} parent=1 // pred_fallthru
      _
    // Predicated region
    $region14: #{tpu_custom_call.1} parent=1 // pred_check
      _
    $region15: #{tpu_custom_call.1} parent=1 // pred_check_branch
      %47 = sbr.rel (0) target = $region17
    $region16: #{tpu_custom_call.1} parent=1 // pred_region
      _
    $region17: #{tpu_custom_call.1} parent=1 // pred_fallthru
      _
    // Predicated region
    $region18: #{tpu_custom_call.1} parent=1 // pred_check
      _
    $region19: #{tpu_custom_call.1} parent=1 // pred_check_branch
      %49 = sbr.rel (0) target = $region21
    $region20: #{tpu_custom_call.1} parent=1 // pred_region
      %s51 = ssub.s32 128, 128
      %52 = vsyncadd [#allocation6], %s51
      %s53 = sshll.u32 [#allocation7], 4
      %s54 = int_to_ptr.vmem [resolvable:$true] %s53
      %59 = dma.hbm_to_vmem [thread:$0]  %s4, 128, %s54, [#allocation6], 64, 64, 4
    $region21: #{tpu_custom_call.1} parent=1 // pred_fallthru
      _
    // Predicated region
    $region22: #{tpu_custom_call.1} parent=1 // pred_check
      _
    $region23: #{tpu_custom_call.1} parent=1 // pred_check_branch
      %61 = sbr.rel (0) target = $region25
    $region24: #{tpu_custom_call.1} parent=1 // pred_region
      _
    $region25: #{tpu_custom_call.1} parent=1 // pred_fallthru
      _
    // Predicated region
    $region26: #{tpu_custom_call.1} parent=1 // pred_check
      _
    $region27: #{tpu_custom_call.1} parent=1 // pred_check_branch
      %63 = sbr.rel (0) target = $region29
    $region28: #{tpu_custom_call.1} parent=1 // pred_region
      %s65 = ssub.s32 256, 256
      %66 = vsyncadd [#allocation9], %s65
      %s67 = sshll.u32 [#allocation8], 4
      %s68 = int_to_ptr.vmem [resolvable:$true] %s67
      %73 = dma.hbm_to_vmem [thread:$0]  %s6, 256, %s68, [#allocation9], 64, 64, 4
    $region29: #{tpu_custom_call.1} parent=1 // pred_fallthru
      _
    // Predicated region
    $region30: #{tpu_custom_call.1} parent=1 // pred_check
      _
    $region31: #{tpu_custom_call.1} parent=1 // pred_check_branch
      %75 = sbr.rel (0) target = $region33
    $region32: #{tpu_custom_call.1} parent=1 // pred_region
      %76 = dma.done [#allocation3], 128
    $region33: #{tpu_custom_call.1} parent=1 // pred_fallthru
      _
    // Predicated region
    $region34: #{tpu_custom_call.1} parent=1 // pred_check
      _
    $region35: #{tpu_custom_call.1} parent=1 // pred_check_branch
      %78 = sbr.rel (0) target = $region37
    $region36: #{tpu_custom_call.1} parent=1 // pred_region
      %79 = dma.done [#allocation6], 256
    $region37: #{tpu_custom_call.1} parent=1 // pred_fallthru
      _
    // Predicated region
    $region38: #{tpu_custom_call.1} parent=1 // pred_check
      _
    $region39: #{tpu_custom_call.1} parent=1 // pred_check_branch
      %81 = sbr.rel (0) target = $region41
    $region40: #{tpu_custom_call.1} parent=1 // pred_region
      %82 = dma.done [#allocation6], 128
    $region41: #{tpu_custom_call.1} parent=1 // pred_fallthru
      _
    // Predicated region
    $region42: #{tpu_custom_call.1} parent=1 // pred_check
      _
    $region43: #{tpu_custom_call.1} parent=1 // pred_check_branch
      %84 = sbr.rel (0) target = $region45
    $region44: #{tpu_custom_call.1} parent=1 // pred_region
      %85 = dma.done [#allocation9], 256
    $region45: #{tpu_custom_call.1} parent=1 // pred_fallthru
      _
    %v87 = vld [vmem:[#allocation2] sm:$0xf]
    %v88 = vld [vmem:[#allocation2 + $0x4] sm:$0xf]
    %v89 = vld [vmem:[%s1] sm:$0xf]
    %v90 = vld [vmem:[%s1 + $0x4] sm:$0xf]
    %v91 = vld [vmem:[%s1 + $0x8] sm:$0xf]
    %v92 = vld [vmem:[%s1 + $0xc] sm:$0xf]
    %v95 = vunpack.c.l.b16 %v87
    %v96 = vunpack.c.l.b16 %v88
    %v97 = vpack.c.b16 %v96, %v95
    %v102 = vunpack.c.l.b16 %v89
    %v103 = vunpack.c.l.b16 %v90
    %v104 = vunpack.c.l.b16 %v91
    %v105 = vunpack.c.l.b16 %v92
    %v106 = vpack.c.b16 %v103, %v102
    %v107 = vpack.c.b16 %v105, %v104
    %vm110 = vcmask 261120
    %v112 = vsel %vm110, %v97, 0
    %114 = vmatprep.subr.bf16.mxu0 0
    %115 = vmatpush1.bf16.msra.mxu0 %v106
    %116 = vmatprep.subr.bf16.mxu0 0
    %117 = vmatpush1.bf16.msra.mxu0 %v107
    %118 = vmatprep.subr.bf16.mxu0 0
    %119 = vmatpush1.bf16.msra.mxu0 0
    %120 = vmatprep.subr.bf16.mxu0 0
    %121 = vmatpush1.bf16.msra.mxu0 0
    %122 = vmatprep.subr.bf16.mxu0 0
    %123 = vmatpush1.bf16.msra.mxu0 0
    %124 = vmatprep.subr.bf16.mxu0 0
    %125 = vmatpush1.bf16.msra.mxu0 0
    %126 = vmatprep.subr.bf16.mxu0 0
    %127 = vmatpush1.bf16.msra.mxu0 0
    %128 = vmatprep.subr.bf16.mxu0 0
    %129 = vmatpush1.bf16.msra.mxu0 0
    %130 = vmatprep.subr.bf16.mxu0 0
    %131 = vmatpush1.bf16.msra.mxu0 0
    %132 = vmatprep.subr.bf16.mxu0 0
    %133 = vmatpush1.bf16.msra.mxu0 0
    %134 = vmatprep.subr.bf16.mxu0 0
    %135 = vmatpush1.bf16.msra.mxu0 0
    %136 = vmatprep.subr.bf16.mxu0 0
    %137 = vmatpush1.bf16.msra.mxu0 0
    %138 = vmatprep.subr.bf16.mxu0 0
    %139 = vmatpush1.bf16.msra.mxu0 0
    %140 = vmatprep.subr.bf16.mxu0 0
    %141 = vmatpush1.bf16.msra.mxu0 0
    %142 = vmatprep.subr.bf16.mxu0 0
    %143 = vmatpush1.bf16.msra.mxu0 0
    %144 = vmatprep.subr.bf16.mxu0 0
    %145 = vmatpush1.bf16.msra.mxu0 0
    %146 = vmatprep.mubr.bf16.mxu0 0
    %147 = vmatmul.mubr.bf16.gmra.mrb[0].mxu0 %v112
    %v148 = vpop.f32.mrb[0].mxu0
    %v149 = vadd.f32 0.0, %v148
    %v150 = vpop.f32.mrb[0].mxu0
    %v151 = vpop.f32.mrb[0].mxu0
    %v152 = vadd.f32 0.0, %v151
    %v153 = vpop.f32.mrb[0].mxu0
    %154 = vdwg.mxu0
    %v155 = vmax.f32 %v149, 0.0
    %v156 = vmax.f32 %v152, 0.0
    %v157 = vpack.c.bf16 %v156, %v155
    %v158 = vld [vmem:[#allocation5] sm:$0xf]
    %v159 = vld [vmem:[#allocation5 + $0x4] sm:$0xf]
    %v160 = vld [vmem:[#allocation5 + $0x8] sm:$0xf]
    %v161 = vld [vmem:[#allocation5 + $0xc] sm:$0xf]
    %v166 = vunpack.c.l.b16 %v158
    %v167 = vunpack.c.l.b16 %v159
    %v168 = vunpack.c.l.b16 %v160
    %v169 = vunpack.c.l.b16 %v161
    %v170 = vpack.c.b16 %v167, %v166
    %v171 = vpack.c.b16 %v169, %v168
    %v175 = vsel %vm110, %v157, 0
    %177 = vmatprep.subr.bf16.mxu0 0
    %178 = vmatpush1.bf16.msra.mxu0 %v170
    %179 = vmatprep.subr.bf16.mxu0 0
    %180 = vmatpush1.bf16.msra.mxu0 %v171
    %181 = vmatprep.subr.bf16.mxu0 0
    %182 = vmatpush1.bf16.msra.mxu0 0
    %183 = vmatprep.subr.bf16.mxu0 0
    %184 = vmatpush1.bf16.msra.mxu0 0
    %185 = vmatprep.subr.bf16.mxu0 0
    %186 = vmatpush1.bf16.msra.mxu0 0
    %187 = vmatprep.subr.bf16.mxu0 0
    %188 = vmatpush1.bf16.msra.mxu0 0
    %189 = vmatprep.subr.bf16.mxu0 0
    %190 = vmatpush1.bf16.msra.mxu0 0
    %191 = vmatprep.subr.bf16.mxu0 0
    %192 = vmatpush1.bf16.msra.mxu0 0
    %193 = vmatprep.subr.bf16.mxu0 0
    %194 = vmatpush1.bf16.msra.mxu0 0
    %195 = vmatprep.subr.bf16.mxu0 0
    %196 = vmatpush1.bf16.msra.mxu0 0
    %197 = vmatprep.subr.bf16.mxu0 0
    %198 = vmatpush1.bf16.msra.mxu0 0
    %199 = vmatprep.subr.bf16.mxu0 0
    %200 = vmatpush1.bf16.msra.mxu0 0
    %201 = vmatprep.subr.bf16.mxu0 0
    %202 = vmatpush1.bf16.msra.mxu0 0
    %203 = vmatprep.subr.bf16.mxu0 0
    %204 = vmatpush1.bf16.msra.mxu0 0
    %205 = vmatprep.subr.bf16.mxu0 0
    %206 = vmatpush1.bf16.msra.mxu0 0
    %207 = vmatprep.subr.bf16.mxu0 0
    %208 = vmatpush1.bf16.msra.mxu0 0
    %209 = vmatprep.mubr.bf16.mxu0 0
    %210 = vmatmul.mubr.bf16.gmra.mrb[0].mxu0 %v175
    %v211 = vpop.f32.mrb[0].mxu0
    %v212 = vadd.f32 0.0, %v211
    %v213 = vpop.f32.mrb[0].mxu0
    %v214 = vpop.f32.mrb[0].mxu0
    %v215 = vadd.f32 0.0, %v214
    %v216 = vpop.f32.mrb[0].mxu0
    %217 = vdwg.mxu0
    %v218 = vmax.f32 %v212, 0.0
    %v219 = vmax.f32 %v215, 0.0
    %v220 = vpack.c.bf16 %v219, %v218
    %v221 = vld [vmem:[%s3] sm:$0xf]
    %v222 = vld [vmem:[%s3 + $0x4] sm:$0xf]
    %v223 = vld [vmem:[%s3 + $0x8] sm:$0xf]
    %v224 = vld [vmem:[%s3 + $0xc] sm:$0xf]
    %v229 = vunpack.c.l.b16 %v221
    %v230 = vunpack.c.l.b16 %v222
    %v231 = vunpack.c.l.b16 %v223
    %v232 = vunpack.c.l.b16 %v224
    %v233 = vpack.c.b16 %v230, %v229
    %v234 = vpack.c.b16 %v232, %v231
    %v238 = vsel %vm110, %v220, 0
    %240 = vmatprep.subr.bf16.mxu0 0
    %241 = vmatpush1.bf16.msra.mxu0 %v233
    %242 = vmatprep.subr.bf16.mxu0 0
    %243 = vmatpush1.bf16.msra.mxu0 %v234
    %244 = vmatprep.subr.bf16.mxu0 0
    %245 = vmatpush1.bf16.msra.mxu0 0
    %246 = vmatprep.subr.bf16.mxu0 0
    %247 = vmatpush1.bf16.msra.mxu0 0
    %248 = vmatprep.subr.bf16.mxu0 0
    %249 = vmatpush1.bf16.msra.mxu0 0
    %250 = vmatprep.subr.bf16.mxu0 0
    %251 = vmatpush1.bf16.msra.mxu0 0
    %252 = vmatprep.subr.bf16.mxu0 0
    %253 = vmatpush1.bf16.msra.mxu0 0
    %254 = vmatprep.subr.bf16.mxu0 0
    %255 = vmatpush1.bf16.msra.mxu0 0
    %256 = vmatprep.subr.bf16.mxu0 0
    %257 = vmatpush1.bf16.msra.mxu0 0
    %258 = vmatprep.subr.bf16.mxu0 0
    %259 = vmatpush1.bf16.msra.mxu0 0
    %260 = vmatprep.subr.bf16.mxu0 0
    %261 = vmatpush1.bf16.msra.mxu0 0
    %262 = vmatprep.subr.bf16.mxu0 0
    %263 = vmatpush1.bf16.msra.mxu0 0
    %264 = vmatprep.subr.bf16.mxu0 0
    %265 = vmatpush1.bf16.msra.mxu0 0
    %266 = vmatprep.subr.bf16.mxu0 0
    %267 = vmatpush1.bf16.msra.mxu0 0
    %268 = vmatprep.subr.bf16.mxu0 0
    %269 = vmatpush1.bf16.msra.mxu0 0
    %270 = vmatprep.subr.bf16.mxu0 0
    %271 = vmatpush1.bf16.msra.mxu0 0
    %272 = vmatprep.mubr.bf16.mxu0 0
    %273 = vmatmul.mubr.bf16.gmra.mrb[0].mxu0 %v238
    %v274 = vpop.f32.mrb[0].mxu0
    %v275 = vadd.f32 0.0, %v274
    %v276 = vpop.f32.mrb[0].mxu0
    %v277 = vpop.f32.mrb[0].mxu0
    %v278 = vadd.f32 0.0, %v277
    %v279 = vpop.f32.mrb[0].mxu0
    %280 = vdwg.mxu0
    %vm281 = vcmask 130048
    %282 = vst.msk [vmem:[#allocation10] sm:$0xff] %vm281, %v275
    %283 = vst.msk [vmem:[#allocation10 + $0x8] sm:$0xff] %vm281, %v278
    %v284 = vpack.c.bf16 %v278, %v275
    %v285 = vld [vmem:[#allocation7] sm:$0xf]
    %v286 = vld [vmem:[#allocation7 + $0x4] sm:$0xf]
    %v289 = vunpack.c.l.b16 %v285
    %v290 = vunpack.c.l.b16 %v286
    %v291 = vpack.c.b16 %v290, %v289
    %v294 = vsel %vm281, %v284, 0
    %296 = vmatprep.subr.bf16.mxu0 0
    %297 = vmatpush1.bf16.msra.mxu0 %v291
    %298 = vmatprep.subr.bf16.mxu0 0
    %299 = vmatpush1.bf16.msra.mxu0 0
    %300 = vmatprep.subr.bf16.mxu0 0
    %301 = vmatpush1.bf16.msra.mxu0 0
    %302 = vmatprep.subr.bf16.mxu0 0
    %303 = vmatpush1.bf16.msra.mxu0 0
    %304 = vmatprep.subr.bf16.mxu0 0
    %305 = vmatpush1.bf16.msra.mxu0 0
    %306 = vmatprep.subr.bf16.mxu0 0
    %307 = vmatpush1.bf16.msra.mxu0 0
    %308 = vmatprep.subr.bf16.mxu0 0
    %309 = vmatpush1.bf16.msra.mxu0 0
    %310 = vmatprep.subr.bf16.mxu0 0
    %311 = vmatpush1.bf16.msra.mxu0 0
    %312 = vmatprep.subr.bf16.mxu0 0
    %313 = vmatpush1.bf16.msra.mxu0 0
    %314 = vmatprep.subr.bf16.mxu0 0
    %315 = vmatpush1.bf16.msra.mxu0 0
    %316 = vmatprep.subr.bf16.mxu0 0
    %317 = vmatpush1.bf16.msra.mxu0 0
    %318 = vmatprep.subr.bf16.mxu0 0
    %319 = vmatpush1.bf16.msra.mxu0 0
    %320 = vmatprep.subr.bf16.mxu0 0
    %321 = vmatpush1.bf16.msra.mxu0 0
    %322 = vmatprep.subr.bf16.mxu0 0
    %323 = vmatpush1.bf16.msra.mxu0 0
    %324 = vmatprep.subr.bf16.mxu0 0
    %325 = vmatpush1.bf16.msra.mxu0 0
    %326 = vmatprep.subr.bf16.mxu0 0
    %327 = vmatpush1.bf16.msra.mxu0 0
    %328 = vmatprep.mubr.bf16.mxu0 0
    %329 = vmatmul.mubr.bf16.gmra.mrb[0].mxu0 %v294
    %v330 = vpop.f32.mrb[0].mxu0
    %v331 = vadd.f32 0.0, %v330
    %v332 = vpop.f32.mrb[0].mxu0
    %v333 = vpop.f32.mrb[0].mxu0
    %v334 = vadd.f32 0.0, %v333
    %v335 = vpop.f32.mrb[0].mxu0
    %336 = vdwg.mxu0
    %v337 = vmax.f32 %v331, 0.0
    %v338 = vmax.f32 %v334, 0.0
    %v339 = vpack.c.bf16 %v338, %v337
    %v340 = vld [vmem:[%s5] sm:$0xf]
    %v341 = vld [vmem:[%s5 + $0x4] sm:$0xf]
    %v342 = vld [vmem:[%s5 + $0x8] sm:$0xf]
    %v343 = vld [vmem:[%s5 + $0xc] sm:$0xf]
    %v348 = vunpack.c.l.b16 %v340
    %v349 = vunpack.c.l.b16 %v341
    %v350 = vunpack.c.l.b16 %v342
    %v351 = vunpack.c.l.b16 %v343
    %v352 = vpack.c.b16 %v349, %v348
    %v353 = vpack.c.b16 %v351, %v350
    %v357 = vsel %vm110, %v339, 0
    %359 = vmatprep.subr.bf16.mxu0 0
    %360 = vmatpush1.bf16.msra.mxu0 %v352
    %361 = vmatprep.subr.bf16.mxu0 0
    %362 = vmatpush1.bf16.msra.mxu0 %v353
    %363 = vmatprep.subr.bf16.mxu0 0
    %364 = vmatpush1.bf16.msra.mxu0 0
    %365 = vmatprep.subr.bf16.mxu0 0
    %366 = vmatpush1.bf16.msra.mxu0 0
    %367 = vmatprep.subr.bf16.mxu0 0
    %368 = vmatpush1.bf16.msra.mxu0 0
    %369 = vmatprep.subr.bf16.mxu0 0
    %370 = vmatpush1.bf16.msra.mxu0 0
    %371 = vmatprep.subr.bf16.mxu0 0
    %372 = vmatpush1.bf16.msra.mxu0 0
    %373 = vmatprep.subr.bf16.mxu0 0
    %374 = vmatpush1.bf16.msra.mxu0 0
    %375 = vmatprep.subr.bf16.mxu0 0
    %376 = vmatpush1.bf16.msra.mxu0 0
    %377 = vmatprep.subr.bf16.mxu0 0
    %378 = vmatpush1.bf16.msra.mxu0 0
    %379 = vmatprep.subr.bf16.mxu0 0
    %380 = vmatpush1.bf16.msra.mxu0 0
    %381 = vmatprep.subr.bf16.mxu0 0
    %382 = vmatpush1.bf16.msra.mxu0 0
    %383 = vmatprep.subr.bf16.mxu0 0
    %384 = vmatpush1.bf16.msra.mxu0 0
    %385 = vmatprep.subr.bf16.mxu0 0
    %386 = vmatpush1.bf16.msra.mxu0 0
    %387 = vmatprep.subr.bf16.mxu0 0
    %388 = vmatpush1.bf16.msra.mxu0 0
    %389 = vmatprep.subr.bf16.mxu0 0
    %390 = vmatpush1.bf16.msra.mxu0 0
    %391 = vmatprep.mubr.bf16.mxu0 0
    %392 = vmatmul.mubr.bf16.gmra.mrb[0].mxu0 %v357
    %v393 = vpop.f32.mrb[0].mxu0
    %v394 = vadd.f32 0.0, %v393
    %v395 = vpop.f32.mrb[0].mxu0
    %v396 = vpop.f32.mrb[0].mxu0
    %v397 = vadd.f32 0.0, %v396
    %v398 = vpop.f32.mrb[0].mxu0
    %399 = vdwg.mxu0
    %v400 = vmax.f32 %v394, 0.0
    %v401 = vmax.f32 %v397, 0.0
    %v402 = vpack.c.bf16 %v401, %v400
    %v403 = vld [vmem:[#allocation8] sm:$0xf]
    %v404 = vld [vmem:[#allocation8 + $0x4] sm:$0xf]
    %v405 = vld [vmem:[#allocation8 + $0x8] sm:$0xf]
    %v406 = vld [vmem:[#allocation8 + $0xc] sm:$0xf]
    %v411 = vunpack.c.l.b16 %v403
    %v412 = vunpack.c.l.b16 %v404
    %v413 = vunpack.c.l.b16 %v405
    %v414 = vunpack.c.l.b16 %v406
    %v415 = vpack.c.b16 %v412, %v411
    %v416 = vpack.c.b16 %v414, %v413
    %v420 = vsel %vm110, %v402, 0
    %422 = vmatprep.subr.bf16.mxu0 0
    %423 = vmatpush1.bf16.msra.mxu0 %v415
    %424 = vmatprep.subr.bf16.mxu0 0
    %425 = vmatpush1.bf16.msra.mxu0 %v416
    %426 = vmatprep.subr.bf16.mxu0 0
    %427 = vmatpush1.bf16.msra.mxu0 0
    %428 = vmatprep.subr.bf16.mxu0 0
    %429 = vmatpush1.bf16.msra.mxu0 0
    %430 = vmatprep.subr.bf16.mxu0 0
    %431 = vmatpush1.bf16.msra.mxu0 0
    %432 = vmatprep.subr.bf16.mxu0 0
    %433 = vmatpush1.bf16.msra.mxu0 0
    %434 = vmatprep.subr.bf16.mxu0 0
    %435 = vmatpush1.bf16.msra.mxu0 0
    %436 = vmatprep.subr.bf16.mxu0 0
    %437 = vmatpush1.bf16.msra.mxu0 0
    %438 = vmatprep.subr.bf16.mxu0 0
    %439 = vmatpush1.bf16.msra.mxu0 0
    %440 = vmatprep.subr.bf16.mxu0 0
    %441 = vmatpush1.bf16.msra.mxu0 0
    %442 = vmatprep.subr.bf16.mxu0 0
    %443 = vmatpush1.bf16.msra.mxu0 0
    %444 = vmatprep.subr.bf16.mxu0 0
    %445 = vmatpush1.bf16.msra.mxu0 0
    %446 = vmatprep.subr.bf16.mxu0 0
    %447 = vmatpush1.bf16.msra.mxu0 0
    %448 = vmatprep.subr.bf16.mxu0 0
    %449 = vmatpush1.bf16.msra.mxu0 0
    %450 = vmatprep.subr.bf16.mxu0 0
    %451 = vmatpush1.bf16.msra.mxu0 0
    %452 = vmatprep.subr.bf16.mxu0 0
    %453 = vmatpush1.bf16.msra.mxu0 0
    %454 = vmatprep.mubr.bf16.mxu0 0
    %455 = vmatmul.mubr.bf16.gmra.mrb[0].mxu0 %v420
    %v456 = vpop.f32.mrb[0].mxu0
    %v457 = vadd.f32 0.0, %v456
    %v458 = vpop.f32.mrb[0].mxu0
    %v459 = vpop.f32.mrb[0].mxu0
    %v460 = vadd.f32 0.0, %v459
    %v461 = vpop.f32.mrb[0].mxu0
    %462 = vdwg.mxu0
    %463 = vst.msk [vmem:[#allocation11] sm:$0xff] %vm110, %v457
    %464 = vst.msk [vmem:[#allocation11 + $0x8] sm:$0xff] %vm110, %v460
    %v465 = vunpack.c.l.bf16 %v87
    %v466 = vunpack.c.l.bf16 %v88
    %v467 = vsub.f32 %v465, %v457
    %v468 = vsub.f32 %v466, %v460
    %v469 = vmul.f32 %v467, %v467
    %v470 = vmul.f32 %v468, %v468
    %v471 = vsel %vm110, %v469, 0.0
    %472 = vadd.xlane.f32.xlu0 %v471
    %v473 = vpop.xlane.xlu0 %472
    %v474 = vsel %vm110, %v470, 0.0
    %475 = vadd.xlane.f32.xlu0 %v474
    %v476 = vpop.xlane.xlu0 %475
    %vm477 = vcmask 7168
    %478 = vst.msk [vmem:[%s9] sm:$0xff] %vm477, %v473
    %479 = vst.msk [vmem:[%s9 + $0x8] sm:$0xff] %vm477, %v476
    // Predicated region
    $region46: #{tpu_custom_call.1} parent=1 // pred_check
      _
    $region47: #{tpu_custom_call.1} parent=1 // pred_check_branch
      %481 = sbr.rel (0) target = $region49
    $region48: #{tpu_custom_call.1} parent=1 // pred_region
      %s483 = ssub.s32 256, 256
      %484 = vsyncadd [#allocation4], %s483
      %s485 = sshll.u32 [#allocation10], 4
      %s486 = int_to_ptr.vmem [resolvable:$true] %s485
      %491 = dma.vmem_to_hbm [thread:$0]  %s486, 256, %s7, [#allocation4], 128, 128, 8
    $region49: #{tpu_custom_call.1} parent=1 // pred_fallthru
      _
    // Predicated region
    $region50: #{tpu_custom_call.1} parent=1 // pred_check
      _
    $region51: #{tpu_custom_call.1} parent=1 // pred_check_branch
      %493 = sbr.rel (0) target = $region53
    $region52: #{tpu_custom_call.1} parent=1 // pred_region
      %s495 = ssub.s32 256, 256
      %496 = vsyncadd [#allocation12], %s495
      %s497 = sshll.u32 [#allocation11], 4
      %s498 = int_to_ptr.vmem [resolvable:$true] %s497
      %503 = dma.vmem_to_hbm [thread:$0]  %s498, 256, %s8, [#allocation12], 128, 128, 8
    $region53: #{tpu_custom_call.1} parent=1 // pred_fallthru
      _
    // Predicated region
    $region54: #{tpu_custom_call.1} parent=1 // pred_check
      _
    $region55: #{tpu_custom_call.1} parent=1 // pred_check_branch
      %505 = sbr.rel (0) target = $region57
    $region56: #{tpu_custom_call.1} parent=1 // pred_region
      _
    $region57: #{tpu_custom_call.1} parent=1 // pred_fallthru
      _
    // Predicated region
    $region58: #{tpu_custom_call.1} parent=1 // pred_check
      _
    $region59: #{tpu_custom_call.1} parent=1 // pred_check_branch
      %507 = sbr.rel (0) target = $region61
    $region60: #{tpu_custom_call.1} parent=1 // pred_region
      %508 = dma.done [#allocation4], 256
    $region61: #{tpu_custom_call.1} parent=1 // pred_fallthru
      _
    // Predicated region
    $region62: #{tpu_custom_call.1} parent=1 // pred_check
      _
    $region63: #{tpu_custom_call.1} parent=1 // pred_check_branch
      %510 = sbr.rel (0) target = $region65
    $region64: #{tpu_custom_call.1} parent=1 // pred_region
      %511 = dma.done [#allocation12], 256
    $region65: #{tpu_custom_call.1} parent=1 // pred_fallthru
      _
    // Predicated region
    $region66: #{tpu_custom_call.1} parent=1 // pred_check
      _
    $region67: #{tpu_custom_call.1} parent=1 // pred_check_branch
      %513 = sbr.rel (0) target = $region69
    $region68: #{tpu_custom_call.1} parent=1 // pred_region
      _
    $region69: #{tpu_custom_call.1} parent=1 // pred_fallthru
      _
    %514 = vsyncpa [#allocation3], 1
    %515 = vsyncpa [#allocation6], 1
    %516 = vsyncpa [#allocation9], 1
    %517 = vsyncpa [#allocation4], 1
    %518 = vsyncpa [#allocation12], 1

</llo_original>
